<compile_context>
chip_gen: v6e
topology: v6e:2x2x1
jax: 0.10.0
libtpu: 0.0.40
codegen_flags: <defaults>
</compile_context>

<pallas_src>
import functools

import jax
import jax.numpy as jnp
from jax.experimental import pallas as pl
from jax.experimental.pallas import tpu as pltpu

_TR_MAX = 2048       # rows per streamed block: 2048*128*4 B = 1 MiB per f32 buffer
_DEFAULT_CORES = 2   # v7x megacore split; plain (cheap) serial loop on 1-TC v5e/v6e


def _num_tensorcores():
    """Best-effort TensorCore count; any value >= 1 is correct (wrapper re-reduces)."""
    try:
        info = pltpu.get_tpu_info()
        for attr in ("num_cores", "core_count", "num_tensorcores",
                     "tensorcore_count", "num_tensor_cores"):
            v = getattr(info, attr, None)
            if isinstance(v, int) and 0 < v <= 8:
                return v
    except Exception:
        pass
    return _DEFAULT_CORES


def _pick_tr(rows):
    """Rows per block for one segment.

    rows <= _TR_MAX: a single block equal to the full row extent (always a legal
    block shape).  Otherwise a (2048,128) block (multiple of 32 sublanes => legal
    for f32/bf16/int8); a ragged last block is masked in-kernel."""
    return rows if rows <= _TR_MAX else _TR_MAX


def _make_index_map(tile_offset, tile_count, tiles_per_core):
    def index_map(c, i):
        t = c * tiles_per_core + i
        # Clamp so the map is always in-bounds; while clamped (segment inactive)
        # the block index repeats, so the pipeline does not re-fetch the block.
        return (jnp.clip(t - tile_offset, 0, tile_count - 1), 0)
    return index_map


def _sums_kernel(*refs, tile_offsets, tile_counts, elem_counts):
    """Accumulates, per segment s, lane-partials of
       [sum(sigmoid(x)*t), sum(sigmoid(x)), sum(t), sum(BCEWithLogits terms)]
    into rows [8s, 8s+4) of the resident per-core output block."""
    o_ref = refs[-1]
    in_refs = refs[:-1]
    n_seg = len(tile_counts)

    c = pl.program_id(0)
    i = pl.program_id(1)
    t_global = c * pl.num_programs(1) + i

    @pl.when(i == 0)
    def _init():
        o_ref[...] = jnp.zeros_like(o_ref)

    def _segment(s):
        off, cnt, n_elems = tile_offsets[s], tile_counts[s], elem_counts[s]
        x_ref, t_ref = in_refs[2 * s], in_refs[2 * s + 1]
        tr = x_ref.shape[0]
        ragged = (n_elems != cnt * tr * 128)          # static per segment

        @pl.when(jnp.logical_and(t_global >= off, t_global < off + cnt))
        def _active():
            j = t_global - off                        # block index within segment
            x = x_ref[...].astype(jnp.float32)
            t = t_ref[...].astype(jnp.float32)

            # 2 EUP transcendentals per element (tanh + log); no approx reciprocal.
            sig = 0.5 * jnp.tanh(0.5 * x) + 0.5
            # BCEWithLogits:  max(x,0) - x*t + log1p(exp(-|x|))
            #              =  max(x,0) - x*t - log(where(x>=0, sig, 1-sig))
            softplus = -jnp.log(jnp.where(x >= 0.0, sig, 1.0 - sig))
            bce = jnp.maximum(x, 0.0) - x * t + softplus

            base = 8 * s

            def _acc(vsig, vt, vbce):
                # Four single-row accumulations (no concat / zero-row padding);
                # the cross-lane reduce happens in the wrapper.
                o_ref[base + 0:base + 1, :] += jnp.sum(vsig * vt, axis=0, keepdims=True)
                o_ref[base + 1:base + 2, :] += jnp.sum(vsig, axis=0, keepdims=True)
                o_ref[base + 2:base + 3, :] += jnp.sum(vt, axis=0, keepdims=True)
                o_ref[base + 3:base + 4, :] += jnp.sum(vbce, axis=0, keepdims=True)

            if not ragged:
                _acc(sig, t, bce)            # hot path: no masking machinery at all
            else:
                @pl.when(j < cnt - 1)
                def _full_block():
                    _acc(sig, t, bce)

                @pl.when(j == cnt - 1)
                def _last_block():
                    # Mask the ragged tail (pad rows / lane padding) of the final
                    # block only.  NOTE: assumes n_elems < 2**31 (int32 index math).
                    remaining = n_elems - j * (tr * 128)
                    elem = (jax.lax.broadcasted_iota(jnp.int32, (tr, 128), 0) * 128
                            + jax.lax.broadcasted_iota(jnp.int32, (tr, 128), 1))
                    valid = elem < remaining
                    zero = jnp.zeros_like(x)
                    _acc(jnp.where(valid, sig, zero),
                         jnp.where(valid, t, zero),
                         jnp.where(valid, bce, zero))

    for s in range(n_seg):
        _segment(s)


def _ce_dice_sums(pairs):
    """pairs: list of (prediction, targets) arrays (any shape; f32/bf16 preds,
    f32/bf16/int8 targets -- the kernel casts to f32 in-register).

    Returns an (n_seg, 4) f32 array of global sums per pair:
      [sum(sigmoid(x)*t), sum(sigmoid(x)), sum(t), sum(BCE-with-logits terms)].
    """
    n_seg = len(pairs)
    elem_counts, row_counts, trs = [], [], []
    for p, t in pairs:
        assert p.shape == t.shape, "prediction/target shape mismatch"
        n = int(p.size)
        rows = pl.cdiv(n, 128)
        elem_counts.append(n)
        row_counts.append(rows)
        trs.append(_pick_tr(rows))

    tile_counts = [pl.cdiv(r, tr) for r, tr in zip(row_counts, trs)]
    tile_offsets = [0]
    for cnt in tile_counts[:-1]:
        tile_offsets.append(tile_offsets[-1] + cnt)
    total_tiles = sum(tile_counts)
    num_cores = max(1, min(_num_tensorcores(), total_tiles))
    tiles_per_core = pl.cdiv(total_tiles, num_cores)

    # Lane-dense (rows, 128) slabs, streamed unpadded (zero-copy reshape) whenever
    # the element count is a multiple of 128; otherwise a small lane pad (rare).
    inputs, in_specs = [], []
    for s, (p, t) in enumerate(pairs):
        n, rows, tr = elem_counts[s], row_counts[s], trs[s]
        imap = _make_index_map(tile_offsets[s], tile_counts[s], tiles_per_core)
        for arr in (p, t):
            flat = arr.reshape(-1)
            if n != rows * 128:
                # TODO(synk): stream a zero-copy prefix + tiny XLA tail instead if
                # non-128-multiple sizes ever show up on the hot path (jnp.pad copies).
                flat = jnp.pad(flat, (0, rows * 128 - n))
            inputs.append(flat.reshape(rows, 128))
            in_specs.append(pl.BlockSpec((tr, 128), imap))

    kernel = functools.partial(
        _sums_kernel,
        tile_offsets=tuple(tile_offsets),
        tile_counts=tuple(tile_counts),
        elem_counts=tuple(elem_counts))

    out_rows = num_cores * 8 * n_seg
    n_total = sum(elem_counts)
    bytes_accessed = int(sum(int(a.size) * a.dtype.itemsize for a in inputs)
                         + out_rows * 128 * 4)
    cost = pl.CostEstimate(flops=13 * n_total, transcendentals=2 * n_total,
                           bytes_accessed=bytes_accessed)

    out = pl.pallas_call(
        kernel,
        out_shape=jax.ShapeDtypeStruct((out_rows, 128), jnp.float32),
        grid_spec=pltpu.PrefetchScalarGridSpec(
            num_scalar_prefetch=0,
            grid=(num_cores, tiles_per_core),
            in_specs=in_specs,
            out_specs=pl.BlockSpec((8 * n_seg, 128), lambda c, i: (c, 0)),
        ),
        compiler_params=pltpu.CompilerParams(
            dimension_semantics=("parallel", "arbitrary")),
        cost_estimate=cost,
    )(*inputs)

    # Tiny final reduction over cores and lanes (f32 lane-partials => good numerics).
    return out.reshape(num_cores, n_seg, 8, 128)[:, :, :4, :].sum(axis=(0, 3))


def _combine(sums4, n_elems, d_weight, smooth):
    intersection = 2.0 * sums4[0] + smooth
    union = sums4[1] + sums4[2] + smooth
    dice = 1.0 - intersection / union
    bce = sums4[3] / jnp.float32(n_elems)
    return d_weight * dice + (1.0 - d_weight) * bce


def ce_dice_loss(prediction, targets, D_weight=0.5, smooth=1e-8):
    """CE_DiceLoss forward: D_weight * Dice + (1 - D_weight) * BCEWithLogits(mean)."""
    sums = _ce_dice_sums([(prediction, targets)])
    return _combine(sums[0], prediction.size, D_weight, smooth)


def ce_dice_loss_2(prediction, targets, prediction_small, targets_small,
                   weight=0.5, D_weight=0.5, smooth=1e-8):
    """Two-scale CE_DiceLoss; both scales streamed through one fused pallas_call."""
    sums = _ce_dice_sums([(prediction, targets),
                          (prediction_small, targets_small)])
    big = _combine(sums[0], prediction.size, D_weight, smooth)
    small = _combine(sums[1], prediction_small.size, D_weight, smooth)
    return weight * big + (1.0 - weight) * small


if __name__ == "__main__":
    key = jax.random.PRNGKey(0)
    k1, k2, k3, k4, k5, k6 = jax.random.split(key, 6)

    # NCHW shapes consistent with a segmentation-style loss.
    B, C, H, W = 2, 4, 16, 16
    Hs, Ws = 8, 8

    prediction = jax.random.normal(k1, (B, C, H, W), dtype=jnp.float32)
    targets = (jax.random.uniform(k2, (B, C, H, W)) > 0.5).astype(jnp.float32)
    prediction_small = jax.random.normal(k3, (B, C, Hs, Ws), dtype=jnp.float32)
    targets_small = (jax.random.uniform(k4, (B, C, Hs, Ws)) > 0.5).astype(jnp.float32)

    # Pure-JAX reference (same math as the PyTorch module, no Pallas).
    def _ref_ce_dice(x, t, D_weight=0.5, smooth=1e-8):
        x = x.astype(jnp.float32)
        t = t.astype(jnp.float32)
        sig = jax.nn.sigmoid(x)
        inter = 2.0 * jnp.sum(sig * t) + smooth
        union = jnp.sum(sig) + jnp.sum(t) + smooth
        dice = 1.0 - inter / union
        bce = jnp.mean(jnp.maximum(x, 0.0) - x * t + jnp.log1p(jnp.exp(-jnp.abs(x))))
        return D_weight * dice + (1.0 - D_weight) * bce

    # 1) Spec module: CE_DiceLoss(prediction, targets).
    loss = ce_dice_loss(prediction, targets)
    ref = _ref_ce_dice(prediction, targets)
    assert jnp.allclose(loss, ref, rtol=5e-4, atol=1e-5), (loss, ref)

    # 2) Fused two-scale variant (one pallas_call streams both scales).
    loss2 = ce_dice_loss_2(prediction, targets, prediction_small, targets_small,
                           weight=0.5, D_weight=0.5)
    ref2 = 0.5 * ref + 0.5 * _ref_ce_dice(prediction_small, targets_small)
    assert jnp.allclose(loss2, ref2, rtol=5e-4, atol=1e-5), (loss2, ref2)

    # 3) Size that is not a multiple of 128 -> exercises the masked-tail path.
    pred_r = jax.random.normal(k5, (2, 3, 7, 11), dtype=jnp.float32)
    targ_r = (jax.random.uniform(k6, (2, 3, 7, 11)) > 0.5).astype(jnp.float32)
    loss3 = ce_dice_loss(pred_r, targ_r)
    ref3 = _ref_ce_dice(pred_r, targ_r)
    assert jnp.allclose(loss3, ref3, rtol=5e-4, atol=1e-5), (loss3, ref3)

    # 4) Narrow dtypes (bf16 predictions / int8 targets) stream directly through the
    #    kernel (no wrapper cast), cutting HBM traffic on the memory-bound path.
    pred_bf16 = prediction.astype(jnp.bfloat16)
    targ_i8 = targets.astype(jnp.int8)
    loss4 = ce_dice_loss(pred_bf16, targ_i8)
    ref4 = _ref_ce_dice(pred_bf16, targ_i8)
    assert jnp.allclose(loss4, ref4, rtol=5e-4, atol=1e-5), (loss4, ref4)

    jax.block_until_ready((loss, loss2, loss3, loss4))
    print("KERNEL_OK")
</pallas_src>

<mosaic_0001>
module attributes {stable_mosaic.version = 11 : i64} {
  func.func @_sums_kernel(%arg0: i32, %arg1: i32, %arg2: memref<16x128xf32, #tpu.memory_space<vmem>>, %arg3: memref<16x128xf32, #tpu.memory_space<vmem>>, %arg4: memref<8x128xf32, #tpu.memory_space<vmem>>) attributes {dimension_semantics = [#tpu.dimension_semantics<parallel>, #tpu.dimension_semantics<arbitrary>], iteration_bounds = array<i64: 1, 1>, scalar_prefetch = 0 : i64, scratch_operands = 0 : i64, tpu.core_type = #tpu.core_type<tc>, window_params = [{transform_indices = @transform_0, window_bounds = array<i64: 16, 128>}, {transform_indices = @transform_1, window_bounds = array<i64: 16, 128>}, {transform_indices = @transform_2, window_bounds = array<i64: 8, 128>}]} {
    %c1_i32 = arith.constant 1 : i32
    %0 = arith.muli %arg0, %c1_i32 : i32
    %1 = arith.addi %0, %arg1 : i32
    %c0_i32 = arith.constant 0 : i32
    %2 = arith.cmpi eq, %arg1, %c0_i32 : i32
    %3 = arith.extui %2 : i1 to i32
    %c0_i32_0 = arith.constant 0 : i32
    %4 = arith.cmpi ne, %3, %c0_i32_0 : i32
    scf.if %4 {
      %cst = arith.constant 0.000000e+00 : f32
      %10 = vector.broadcast %cst : f32 to vector<8x128xf32>
      %c0 = arith.constant 0 : index
      %c0_4 = arith.constant 0 : index
      %11 = vector.load %arg4[%c0, %c0_4] : memref<8x128xf32, #tpu.memory_space<vmem>>, vector<8x128xf32>
      tpu.vector_store %arg4[%c0, %c0_4], %10 {strides = array<i32>} : memref<8x128xf32, #tpu.memory_space<vmem>>, vector<8x128xf32>,
    } else {
    }
    %c0_i32_1 = arith.constant 0 : i32
    %5 = arith.cmpi sge, %1, %c0_i32_1 : i32
    %c1_i32_2 = arith.constant 1 : i32
    %6 = arith.cmpi slt, %1, %c1_i32_2 : i32
    %7 = arith.andi %5, %6 : i1
    %8 = arith.extui %7 : i1 to i32
    %c0_i32_3 = arith.constant 0 : i32
    %9 = arith.cmpi ne, %8, %c0_i32_3 : i32
    scf.if %9 {
      %c0 = arith.constant 0 : index
      %c0_4 = arith.constant 0 : index
      %10 = vector.load %arg2[%c0, %c0_4] : memref<16x128xf32, #tpu.memory_space<vmem>>, vector<16x128xf32>
      %c0_5 = arith.constant 0 : index
      %c0_6 = arith.constant 0 : index
      %11 = vector.load %arg3[%c0_5, %c0_6] : memref<16x128xf32, #tpu.memory_space<vmem>>, vector<16x128xf32>
      %cst = arith.constant 5.000000e-01 : f32
      %12 = vector.broadcast %cst : f32 to vector<16x128xf32>
      %13 = arith.mulf %12, %10 : vector<16x128xf32>
      %14 = math.tanh %13 : vector<16x128xf32>
      %cst_7 = arith.constant 5.000000e-01 : f32
      %15 = vector.broadcast %cst_7 : f32 to vector<16x128xf32>
      %16 = arith.mulf %15, %14 : vector<16x128xf32>
      %cst_8 = arith.constant 5.000000e-01 : f32
      %17 = vector.broadcast %cst_8 : f32 to vector<16x128xf32>
      %18 = arith.addf %16, %17 : vector<16x128xf32>
      %cst_9 = arith.constant 0.000000e+00 : f32
      %19 = vector.broadcast %cst_9 : f32 to vector<16x128xf32>
      %20 = arith.cmpf oge, %10, %19 : vector<16x128xf32>
      %cst_10 = arith.constant 1.000000e+00 : f32
      %21 = vector.broadcast %cst_10 : f32 to vector<16x128xf32>
      %22 = arith.subf %21, %18 : vector<16x128xf32>
      %23 = arith.select %20, %18, %22 : vector<16x128xi1>, vector<16x128xf32>
      %24 = math.log %23 : vector<16x128xf32>
      %cst_11 = arith.constant 0.000000e+00 : f32
      %25 = vector.broadcast %cst_11 : f32 to vector<16x128xf32>
      %26 = arith.subf %25, %24 : vector<16x128xf32>
      %cst_12 = arith.constant 0.000000e+00 : f32
      %27 = vector.broadcast %cst_12 : f32 to vector<16x128xf32>
      %28 = arith.maximumf %10, %27 : vector<16x128xf32>
      %29 = arith.mulf %10, %11 : vector<16x128xf32>
      %30 = arith.subf %28, %29 : vector<16x128xf32>
      %31 = arith.addf %30, %26 : vector<16x128xf32>
      %c0_13 = arith.constant 0 : index
      %c0_14 = arith.constant 0 : index
      %32 = vector.load %arg4[%c0_13, %c0_14] : memref<8x128xf32, #tpu.memory_space<vmem>>, vector<1x128xf32>
      %33 = arith.mulf %18, %11 : vector<16x128xf32>
      %cst_15 = arith.constant dense<0.000000e+00> : vector<128xf32>
      %34 = vector.multi_reduction <add>, %33, %cst_15 [0] : vector<16x128xf32> to vector<128xf32>
      %35 = vector.shape_cast %34 : vector<128xf32> to vector<1x128xf32>
      %36 = arith.addf %32, %35 : vector<1x128xf32>
      %c0_16 = arith.constant 0 : index
      %c0_17 = arith.constant 0 : index
      %37 = vector.load %arg4[%c0_16, %c0_17] : memref<8x128xf32, #tpu.memory_space<vmem>>, vector<1x128xf32>
      tpu.vector_store %arg4[%c0_16, %c0_17], %36 {strides = array<i32>} : memref<8x128xf32, #tpu.memory_space<vmem>>, vector<1x128xf32>,
      %c1 = arith.constant 1 : index
      %c0_18 = arith.constant 0 : index
      %38 = vector.load %arg4[%c1, %c0_18] : memref<8x128xf32, #tpu.memory_space<vmem>>, vector<1x128xf32>
      %cst_19 = arith.constant dense<0.000000e+00> : vector<128xf32>
      %39 = vector.multi_reduction <add>, %18, %cst_19 [0] : vector<16x128xf32> to vector<128xf32>
      %40 = vector.shape_cast %39 : vector<128xf32> to vector<1x128xf32>
      %41 = arith.addf %38, %40 : vector<1x128xf32>
      %c1_20 = arith.constant 1 : index
      %c0_21 = arith.constant 0 : index
      %42 = vector.load %arg4[%c1_20, %c0_21] : memref<8x128xf32, #tpu.memory_space<vmem>>, vector<1x128xf32>
      tpu.vector_store %arg4[%c1_20, %c0_21], %41 {strides = array<i32>} : memref<8x128xf32, #tpu.memory_space<vmem>>, vector<1x128xf32>,
      %c2 = arith.constant 2 : index
      %c0_22 = arith.constant 0 : index
      %43 = vector.load %arg4[%c2, %c0_22] : memref<8x128xf32, #tpu.memory_space<vmem>>, vector<1x128xf32>
      %cst_23 = arith.constant dense<0.000000e+00> : vector<128xf32>
      %44 = vector.multi_reduction <add>, %11, %cst_23 [0] : vector<16x128xf32> to vector<128xf32>
      %45 = vector.shape_cast %44 : vector<128xf32> to vector<1x128xf32>
      %46 = arith.addf %43, %45 : vector<1x128xf32>
      %c2_24 = arith.constant 2 : index
      %c0_25 = arith.constant 0 : index
      %47 = vector.load %arg4[%c2_24, %c0_25] : memref<8x128xf32, #tpu.memory_space<vmem>>, vector<1x128xf32>
      tpu.vector_store %arg4[%c2_24, %c0_25], %46 {strides = array<i32>} : memref<8x128xf32, #tpu.memory_space<vmem>>, vector<1x128xf32>,
      %c3 = arith.constant 3 : index
      %c0_26 = arith.constant 0 : index
      %48 = vector.load %arg4[%c3, %c0_26] : memref<8x128xf32, #tpu.memory_space<vmem>>, vector<1x128xf32>
      %cst_27 = arith.constant dense<0.000000e+00> : vector<128xf32>
      %49 = vector.multi_reduction <add>, %31, %cst_27 [0] : vector<16x128xf32> to vector<128xf32>
      %50 = vector.shape_cast %49 : vector<128xf32> to vector<1x128xf32>
      %51 = arith.addf %48, %50 : vector<1x128xf32>
      %c3_28 = arith.constant 3 : index
      %c0_29 = arith.constant 0 : index
      %52 = vector.load %arg4[%c3_28, %c0_29] : memref<8x128xf32, #tpu.memory_space<vmem>>, vector<1x128xf32>
      tpu.vector_store %arg4[%c3_28, %c0_29], %51 {strides = array<i32>} : memref<8x128xf32, #tpu.memory_space<vmem>>, vector<1x128xf32>,
    } else {
    }
    return
  }
  func.func @transform_0(%arg0: i32, %arg1: i32) -> (i32, i32) {
    %c1_i32 = arith.constant 1 : i32
    %0 = arith.muli %arg0, %c1_i32 : i32
    %1 = arith.addi %0, %arg1 : i32
    %c0_i32 = arith.constant 0 : i32
    %2 = arith.subi %1, %c0_i32 : i32
    %c0_i32_0 = arith.constant 0 : i32
    %c0_i32_1 = arith.constant 0 : i32
    %3 = arith.maxsi %c0_i32_0, %2 : i32
    %4 = arith.minsi %c0_i32_1, %3 : i32
    %c0_i32_2 = arith.constant 0 : i32
    %c0_i32_3 = arith.constant 0 : i32
    return %4, %c0_i32_2 : i32, i32
  }
  func.func @transform_1(%arg0: i32, %arg1: i32) -> (i32, i32) {
    %c1_i32 = arith.constant 1 : i32
    %0 = arith.muli %arg0, %c1_i32 : i32
    %1 = arith.addi %0, %arg1 : i32
    %c0_i32 = arith.constant 0 : i32
    %2 = arith.subi %1, %c0_i32 : i32
    %c0_i32_0 = arith.constant 0 : i32
    %c0_i32_1 = arith.constant 0 : i32
    %3 = arith.maxsi %c0_i32_0, %2 : i32
    %4 = arith.minsi %c0_i32_1, %3 : i32
    %c0_i32_2 = arith.constant 0 : i32
    %c0_i32_3 = arith.constant 0 : i32
    return %4, %c0_i32_2 : i32, i32
  }
  func.func @transform_2(%arg0: i32, %arg1: i32) -> (i32, i32) {
    %c0_i32 = arith.constant 0 : i32
    %c0_i32_0 = arith.constant 0 : i32
    return %arg0, %c0_i32 : i32, i32
  }
}

</mosaic_0001>

<llo_original>
// kernel: tpu_custom_call.1
$region0: #{tpu_custom_call.1}
  #allocation0 [shape = 'u32[]', space=smem, size = 0x4, offset = 0x4, fixed_abs, tag = 'smem constant byte address 0x4 - core index']
  #allocation1 [shape = 'u32[144,128]{1,0:T(1,128)}', space=vmem, size = 0x12000, scoped, tag = 'internal scratch']
  %s0 = inlined_call_operand.hbm [shape: f32[16,128], index: 0, kind: input, shape index: {}]
  %s1 = inlined_call_operand.hbm [shape: f32[16,128], index: 1, kind: input, shape index: {}]
  %s2 = inlined_call_operand.hbm [shape: f32[8,128], index: 2, kind: output, shape index: {}]
  %s3 = sld [smem:[#allocation0]]
  $region34: #{tpu_custom_call.1} parent=0
    _
  %s5 = ssub.s32 1, %s3
  %s6 = scalar_select 0, %s5, %s3
  $region1: #{tpu_custom_call.1} parent=0
    #allocation2 [shape = 'u8[8192]{0}', space=vmem, size = 0x2000, scoped, tag = 'input window, operand 0, single buffered']
    #allocation3 [shape = 's32[1]{0}', space=sflag, size = 0x4, scoped, tag = 'scoped memory for tpu_custom_call.1']
    #allocation4 [shape = 's32[1]{0}', space=sflag, size = 0x4, scoped, tag = 'scoped memory for tpu_custom_call.1']
    #allocation5 [shape = 'u8[8192]{0}', space=vmem, size = 0x2000, scoped, tag = 'input window, operand 1, single buffered']
    #allocation6 [shape = 's32[1]{0}', space=sflag, size = 0x4, scoped, tag = 'scoped memory for tpu_custom_call.1']
    #allocation7 [shape = 'u8[4096]{0}', space=vmem, size = 0x1000, scoped, tag = 'output window, operand 0, single buffered']
    %7 = vsyncpa [#allocation3], 0
    %8 = vsyncpa [#allocation6], 0
    %9 = vsyncpa [#allocation4], 0
    // Predicated region
    $region2: #{tpu_custom_call.1} parent=1 // pred_check
      _
    $region3: #{tpu_custom_call.1} parent=1 // pred_check_branch
      %11 = sbr.rel (0) target = $region5
    $region4: #{tpu_custom_call.1} parent=1 // pred_region
      %s12 = sadd.s32 0, 0
      %p13 = scmp.gt.s32.totalorder %s12, 0
      %s14 = scalar_select %p13, %s12, 0
      %p15 = scmp.lt.s32.totalorder %s14, 0
      %s16 = scalar_select %p15, %s14, 0
      %s17 = smul.u32 2, %s16
      %s19 = ssub.s32 256, 256
      %20 = vsyncadd [#allocation3], %s19
      %s21 = smul.addr %s17, 128
      %s22 = scalar_lea.hbm %s0, %s21
      %s23 = sshll.u32 [#allocation2], 4
      %s24 = int_to_ptr.vmem [resolvable:$true] %s23
      %29 = dma.hbm_to_vmem [thread:$0]  %s22, 256, %s24, [#allocation3], 128, 128, 8
    $region5: #{tpu_custom_call.1} parent=1 // pred_fallthru
      _
    // Predicated region
    $region6: #{tpu_custom_call.1} parent=1 // pred_check
      _
    $region7: #{tpu_custom_call.1} parent=1 // pred_check_branch
      %31 = sbr.rel (0) target = $region9
    $region8: #{tpu_custom_call.1} parent=1 // pred_region
      %s32 = sadd.s32 0, 0
      %p33 = scmp.gt.s32.totalorder %s32, 0
      %s34 = scalar_select %p33, %s32, 0
      %p35 = scmp.lt.s32.totalorder %s34, 0
      %s36 = scalar_select %p35, %s34, 0
      %s37 = smul.u32 2, %s36
      %s39 = ssub.s32 256, 256
      %40 = vsyncadd [#allocation6], %s39
      %s41 = smul.addr %s37, 128
      %s42 = scalar_lea.hbm %s1, %s41
      %s43 = sshll.u32 [#allocation5], 4
      %s44 = int_to_ptr.vmem [resolvable:$true] %s43
      %49 = dma.hbm_to_vmem [thread:$0]  %s42, 256, %s44, [#allocation6], 128, 128, 8
    $region9: #{tpu_custom_call.1} parent=1 // pred_fallthru
      _
    // Predicated region
    $region10: #{tpu_custom_call.1} parent=1 // pred_check
      _
    $region11: #{tpu_custom_call.1} parent=1 // pred_check_branch
      %51 = sbr.rel (0) target = $region13
    $region12: #{tpu_custom_call.1} parent=1 // pred_region
      %52 = dma.done [#allocation3], 256
    $region13: #{tpu_custom_call.1} parent=1 // pred_fallthru
      _
    // Predicated region
    $region14: #{tpu_custom_call.1} parent=1 // pred_check
      _
    $region15: #{tpu_custom_call.1} parent=1 // pred_check_branch
      %54 = sbr.rel (0) target = $region17
    $region16: #{tpu_custom_call.1} parent=1 // pred_region
      %55 = dma.done [#allocation6], 256
    $region17: #{tpu_custom_call.1} parent=1 // pred_fallthru
      _
    %s56 = sadd.s32 0, 0
    %p57 = scmp.gt.s32.totalorder %s56, 0
    %s58 = scalar_select %p57, %s56, 0
    %p59 = scmp.lt.s32.totalorder %s58, 0
    %s60 = scalar_select %p59, %s58, 0
    %s61 = smul.u32 2, %s60
    %s62 = sadd.s32 0, 0
    %p63 = scmp.gt.s32.totalorder %s62, 0
    %s64 = scalar_select %p63, %s62, 0
    %p65 = scmp.lt.s32.totalorder %s64, 0
    %s66 = scalar_select %p65, %s64, 0
    %s67 = smul.u32 2, %s66
    %s68 = sadd.s32 0, 0
    %p69 = scmp.eq.s32.totalorder 0, 0
    // Predicated region
    $region18: #{tpu_custom_call.1} parent=1 // pred_check
      %p70 = pneg %p69
    $region19: #{tpu_custom_call.1} parent=1 // pred_check_branch
      %72 = sbr.rel (%p70) target = $region21
    $region20: #{tpu_custom_call.1} parent=1 // pred_region
      %73 = vst [vmem:[#allocation7] sm:$0xff] 0.0
    $region21: #{tpu_custom_call.1} parent=1 // pred_fallthru
      _
    %p74 = scmp.ge.s32.totalorder %s68, 0
    %p75 = scmp.lt.s32.totalorder %s68, 1
    %p76 = pnand %p74, %p75
    %p77 = pneg %p76
    // Predicated region
    $region22: #{tpu_custom_call.1} parent=1 // pred_check
      _
    $region23: #{tpu_custom_call.1} parent=1 // pred_check_branch
      %79 = sbr.rel (%p76) target = $region25
    $region24: #{tpu_custom_call.1} parent=1 // pred_region
      %v80 = vld [vmem:[#allocation2] sm:$0xff]
      %v81 = vld [vmem:[#allocation2 + $0x8] sm:$0xff]
      %v82 = vld [vmem:[#allocation5] sm:$0xff]
      %v83 = vld [vmem:[#allocation5 + $0x8] sm:$0xff]
      %v84 = vmul.f32 %v80, 0.5
      %v85 = vmul.f32 %v81, 0.5
      %v86 = vtanh.pop %v84
      %v87 = vtanh.pop %v85
      %v88 = vmul.f32 %v86, 0.5
      %v89 = vmul.f32 %v87, 0.5
      %v90 = vadd.f32 %v88, 0.5
      %v91 = vadd.f32 %v89, 0.5
      %vm92 = vcmp.ge.f32.partialorder %v80, 0.0
      %vm93 = vcmp.ge.f32.partialorder %v81, 0.0
      %v94 = vsub.f32 1.0, %v90
      %v95 = vsub.f32 1.0, %v91
      %v96 = vsel %vm92, %v90, %v94
      %v97 = vsel %vm93, %v91, %v95
      %v98 = vlog2.pop %v96
      %v99 = vmul.f32 %v98, 0.6931472
      %v100 = vlog2.pop %v97
      %v101 = vmul.f32 %v100, 0.6931472
      %v102 = vsub.f32 0.0, %v99
      %v103 = vsub.f32 0.0, %v101
      %v104 = vmax.f32 %v80, 0.0
      %v105 = vmax.f32 %v81, 0.0
      %v106 = vmul.f32 %v80, %v82
      %v107 = vmul.f32 %v81, %v83
      %v108 = vsub.f32 %v104, %v106
      %v109 = vsub.f32 %v105, %v107
      %v110 = vadd.f32 %v108, %v102
      %v111 = vadd.f32 %v109, %v103
      %v112 = vld [vmem:[#allocation7] sm:$0x1]
      %v113 = vmul.f32 %v90, %v82
      %v114 = vmul.f32 %v91, %v83
      %v115 = vadd.f32 %v113, %v114
      %v116 = vrot.slane %v115, 4
      %v117 = vadd.f32 %v115, %v116
      %v118 = vrot.slane %v117, 2
      %v119 = vadd.f32 %v117, %v118
      %v120 = vrot.slane %v119, 1
      %v121 = vadd.f32 %v119, %v120
      %v122 = vadd.f32 %v112, %v121
      %123 = vst [vmem:[#allocation7] sm:$0x1] %v122
      %v124 = vld [vmem:[#allocation7 + $0x1] sm:$0x1]
      %v125 = vadd.f32 %v90, %v91
      %v126 = vrot.slane %v125, 4
      %v127 = vadd.f32 %v125, %v126
      %v128 = vrot.slane %v127, 2
      %v129 = vadd.f32 %v127, %v128
      %v130 = vrot.slane %v129, 1
      %v131 = vadd.f32 %v129, %v130
      %v132 = vadd.f32 %v124, %v131
      %133 = vst [vmem:[#allocation7 + $0x1] sm:$0x1] %v132
      %v134 = vld [vmem:[#allocation7 + $0x2] sm:$0x1]
      %v135 = vadd.f32 %v82, %v83
      %v136 = vrot.slane %v135, 4
      %v137 = vadd.f32 %v135, %v136
      %v138 = vrot.slane %v137, 2
      %v139 = vadd.f32 %v137, %v138
      %v140 = vrot.slane %v139, 1
      %v141 = vadd.f32 %v139, %v140
      %v142 = vadd.f32 %v134, %v141
      %143 = vst [vmem:[#allocation7 + $0x2] sm:$0x1] %v142
      %v144 = vld [vmem:[#allocation7 + $0x3] sm:$0x1]
      %v145 = vadd.f32 %v110, %v111
      %v146 = vrot.slane %v145, 4
      %v147 = vadd.f32 %v145, %v146
      %v148 = vrot.slane %v147, 2
      %v149 = vadd.f32 %v147, %v148
      %v150 = vrot.slane %v149, 1
      %v151 = vadd.f32 %v149, %v150
      %v152 = vadd.f32 %v144, %v151
      %153 = vst [vmem:[#allocation7 + $0x3] sm:$0x1] %v152
    $region25: #{tpu_custom_call.1} parent=1 // pred_fallthru
      _
    // Predicated region
    $region26: #{tpu_custom_call.1} parent=1 // pred_check
      _
    $region27: #{tpu_custom_call.1} parent=1 // pred_check_branch
      %155 = sbr.rel (0) target = $region29
    $region28: #{tpu_custom_call.1} parent=1 // pred_region
      %s157 = ssub.s32 128, 128
      %158 = vsyncadd [#allocation4], %s157
      %s160 = sshll.u32 [#allocation7], 4
      %s161 = int_to_ptr.vmem [resolvable:$true] %s160
      %163 = dma.vmem_to_hbm [thread:$0]  %s161, 128, %s2, [#allocation4]
    $region29: #{tpu_custom_call.1} parent=1 // pred_fallthru
      _
    // Predicated region
    $region30: #{tpu_custom_call.1} parent=1 // pred_check
      _
    $region31: #{tpu_custom_call.1} parent=1 // pred_check_branch
      %165 = sbr.rel (0) target = $region33
    $region32: #{tpu_custom_call.1} parent=1 // pred_region
      %166 = dma.done [#allocation4], 128
    $region33: #{tpu_custom_call.1} parent=1 // pred_fallthru
      _
    %167 = vsyncpa [#allocation3], 1
    %168 = vsyncpa [#allocation6], 1
    %169 = vsyncpa [#allocation4], 1

</llo_original>
